<compile_context>
chip_gen: v6e
topology: v6e:2x2x1
jax: 0.10.0
libtpu: 0.0.40
codegen_flags: <defaults>
</compile_context>

<pallas_src>
import jax
import jax.numpy as jnp
from jax.experimental import pallas as pl
from jax.experimental.pallas import tpu as pltpu


def _round_up(x, m):
    return (x + m - 1) // m * m


def _advisor_kernel(pack_ref, pool_ref, w1p_ref, w1q_ref, b1_ref, w2_ref,
                    b2_ref, scores_ref, probs_ref):
    """Fused MLP scorer + masked softmax over cards in the pack."""
    pack = pack_ref[...]                                   # (TB, C) f32
    pool = pool_ref[...]                                   # (TB, C) f32

    # h = relu(pack @ W1_pack + pool @ W1_pool + b1)   (bf16 MXU, f32 acc)
    h = jnp.dot(pack.astype(jnp.bfloat16), w1p_ref[...],
                preferred_element_type=jnp.float32)
    h = h + jnp.dot(pool.astype(jnp.bfloat16), w1q_ref[...],
                    preferred_element_type=jnp.float32)
    h = jnp.maximum(h + b1_ref[...], 0.0)                  # (TB, H) f32

    # scores = h @ W2 + b2
    s = jnp.dot(h.astype(jnp.bfloat16), w2_ref[...],
                preferred_element_type=jnp.float32)
    s = s + b2_ref[...]                                    # (TB, C) f32
    scores_ref[...] = s

    # fused pick(): softmax restricted to cards with pack > 0.
    in_pack = pack > 0.0
    in_pack_f = in_pack.astype(jnp.float32)
    masked = jnp.where(in_pack, s, jnp.float32(-1e30))
    m = jnp.max(masked, axis=-1, keepdims=True)
    e = jnp.exp(masked - m) * in_pack_f                    # exact 0 outside pack
    denom = jnp.sum(e, axis=-1, keepdims=True)
    denom = jnp.where(denom > 0.0, denom, 1.0)             # empty pack -> all-zero probs
    probs_ref[...] = e * pl.reciprocal(denom, approx=True)


def _run_scorer(pack, pool, w1p, w1q, b1, w2, b2):
    """pack/pool: (B, C) f32.  Returns (scores, probs), each (B, C) f32."""
    B, C = pack.shape
    H = w1p.shape[1]

    if B <= 8:
        # single block covering the full batch (legal: block == full array dims)
        tb, b_pad = B, B
    else:
        tb = 8
        b_pad = _round_up(B, tb)
        if b_pad != B:
            z = jnp.zeros((b_pad - B, C), pack.dtype)
            pack = jnp.concatenate([pack, z], axis=0)
            pool = jnp.concatenate([pool, z], axis=0)

    grid = (b_pad // tb,)
    batch_spec = pl.BlockSpec((tb, C), lambda i: (i, 0))
    full = lambda shape: pl.BlockSpec(shape, lambda i: (0, 0))

    scores, probs = pl.pallas_call(
        _advisor_kernel,
        grid=grid,
        in_specs=[
            batch_spec,                 # pack
            batch_spec,                 # pool
            full((C, H)),               # W1_pack (bf16)
            full((C, H)),               # W1_pool (bf16)
            full((1, H)),               # b1 (f32)
            full((H, C)),               # W2 (bf16)
            full((1, C)),               # b2 (f32)
        ],
        out_specs=[batch_spec, batch_spec],
        out_shape=(
            jax.ShapeDtypeStruct((b_pad, C), jnp.float32),
            jax.ShapeDtypeStruct((b_pad, C), jnp.float32),
        ),
        compiler_params=pltpu.CompilerParams(
            dimension_semantics=("parallel",)),   # shards batch tiles on v7x's 2 TCs
    )(pack, pool, w1p, w1q, b1, w2, b2)
    return scores[:B], probs[:B]


class PickAdvisor:
    """Concrete Pallas-backed PickAdvisor.

    draft_state["pack"]: (num_cards,) or (B, num_cards) multi-hot of cards in the pack
    draft_state["pool"]: (num_cards,) or (B, num_cards) counts of cards already picked
    forward() -> pick scores, pick() -> softmax over the cards in the pack.
    """

    _LANE = 128

    def __init__(self, card_names, hidden=128, seed=0):
        self.card_names = list(card_names)
        self.num_cards = len(self.card_names)
        # pad vocab / hidden up to lane multiples so the kernel output stays
        # lane-dense; the padded tail is sliced off in the wrapper.
        self._C = max(_round_up(self.num_cards, self._LANE), self._LANE)
        self._H = max(_round_up(hidden, self._LANE), self._LANE)

        k = jax.random.PRNGKey(seed)
        k1, k2, k3, k4, k5 = jax.random.split(k, 5)
        C, H = self._C, self._H
        # bf16 weights (f32 accumulation inside the kernel), f32 biases.
        self.w1_pack = (jax.random.normal(k1, (C, H), jnp.float32) * 0.02).astype(jnp.bfloat16)
        self.w1_pool = (jax.random.normal(k2, (C, H), jnp.float32) * 0.02).astype(jnp.bfloat16)
        self.b1 = jax.random.normal(k3, (1, H), jnp.float32) * 0.02
        self.w2 = (jax.random.normal(k4, (H, C), jnp.float32) * 0.02).astype(jnp.bfloat16)
        self.b2 = jax.random.normal(k5, (1, C), jnp.float32) * 0.02

    def _featurize(self, pack, pool):
        pack = jnp.atleast_2d(jnp.asarray(pack, jnp.float32))
        pool = jnp.atleast_2d(jnp.asarray(pool, jnp.float32))
        pad_c = self._C - self.num_cards
        if pad_c:
            z = jnp.zeros((pack.shape[0], pad_c), jnp.float32)
            pack = jnp.concatenate([pack, z], axis=-1)
            pool = jnp.concatenate([pool, z], axis=-1)
        return pack, pool

    def _score(self, draft_state):
        pack_in = jnp.asarray(draft_state["pack"], jnp.float32)
        single = pack_in.ndim == 1
        pack, pool = self._featurize(pack_in, draft_state["pool"])
        scores, probs = _run_scorer(pack, pool, self.w1_pack, self.w1_pool,
                                    self.b1, self.w2, self.b2)
        scores = scores[:, : self.num_cards]
        probs = probs[:, : self.num_cards]
        if single:
            return scores[0], probs[0]
        return scores, probs

    def forward(self, draft_state):
        """Differentiable pick scores, shape (num_cards,) or (B, num_cards)."""
        scores, _ = self._score(draft_state)
        return scores

    def pick(self, draft_state):
        """Softmax over cards in the pack (all-zero if the pack is empty)."""
        _, probs = self._score(draft_state)
        return probs


if __name__ == "__main__":
    NUM_CARDS = 120   # deliberately not a lane multiple -> exercises padding path
    HIDDEN = 96

    card_names = [f"card_{i}" for i in range(NUM_CARDS)]
    advisor = PickAdvisor(card_names, hidden=HIDDEN, seed=0)

    key = jax.random.PRNGKey(0)
    k_pack, k_pool, k_bpack, k_bpool = jax.random.split(key, 4)

    # --- single draft state: 15-card pack (multi-hot) + pool counts ---------
    pack_idx = jax.random.choice(k_pack, NUM_CARDS, (15,), replace=False)
    pack = jnp.zeros((NUM_CARDS,), jnp.float32).at[pack_idx].set(1.0)
    pool = jax.random.randint(k_pool, (NUM_CARDS,), 0, 3).astype(jnp.float32)
    draft_state = {"pack": pack, "pool": pool}

    scores = advisor.forward(draft_state)
    probs = advisor.pick(draft_state)
    jax.block_until_ready((scores, probs))
    assert scores.shape == (NUM_CARDS,)
    assert probs.shape == (NUM_CARDS,)

    # --- batched draft states (grid over 8-row batch tiles, "parallel") -----
    B = 16
    bpack = (jax.random.uniform(k_bpack, (B, NUM_CARDS)) < 0.15).astype(jnp.float32)
    bpool = jax.random.randint(k_bpool, (B, NUM_CARDS), 0, 3).astype(jnp.float32)
    bstate = {"pack": bpack, "pool": bpool}
    bscores = advisor.forward(bstate)
    bprobs = advisor.pick(bstate)
    jax.block_until_ready((bscores, bprobs))
    assert bscores.shape == (B, NUM_CARDS)
    assert bprobs.shape == (B, NUM_CARDS)

    # --- plain-JAX reference (same bf16 weights, f32 accumulation) ----------
    def ref_fn(pack_2d, pool_2d):
        pk, pq = advisor._featurize(pack_2d, pool_2d)
        h = (jnp.dot(pk.astype(jnp.bfloat16), advisor.w1_pack,
                     preferred_element_type=jnp.float32)
             + jnp.dot(pq.astype(jnp.bfloat16), advisor.w1_pool,
                       preferred_element_type=jnp.float32))
        h = jnp.maximum(h + advisor.b1, 0.0)
        s = (jnp.dot(h.astype(jnp.bfloat16), advisor.w2,
                     preferred_element_type=jnp.float32) + advisor.b2)
        s = s[:, : advisor.num_cards]
        mask = jnp.asarray(pack_2d, jnp.float32) > 0
        p = jax.nn.softmax(jnp.where(mask, s, -jnp.inf), axis=-1)
        p = jnp.where(mask.any(axis=-1, keepdims=True), p, 0.0)
        return s, p

    ref_s, ref_p = ref_fn(pack[None], pool[None])
    assert jnp.allclose(scores, ref_s[0], atol=1e-3, rtol=1e-3)
    assert jnp.allclose(probs, ref_p[0], atol=5e-3, rtol=1e-2)

    ref_bs, ref_bp = ref_fn(bpack, bpool)
    assert jnp.allclose(bscores, ref_bs, atol=1e-3, rtol=1e-3)
    assert jnp.allclose(bprobs, ref_bp, atol=5e-3, rtol=1e-2)

    # --- empty-pack guard: zero probs, no NaNs -------------------------------
    empty_state = {"pack": jnp.zeros((NUM_CARDS,), jnp.float32), "pool": pool}
    eprobs = advisor.pick(empty_state)
    jax.block_until_ready(eprobs)
    assert not bool(jnp.any(jnp.isnan(eprobs)))
    assert bool(jnp.all(eprobs == 0.0))

    print("KERNEL_OK")
</pallas_src>

<mosaic_0001>
module attributes {stable_mosaic.version = 11 : i64} {
  func.func @_advisor_kernel(%arg0: i32, %arg1: memref<1x128xf32, #tpu.memory_space<vmem>>, %arg2: memref<1x128xf32, #tpu.memory_space<vmem>>, %arg3: memref<128x128xbf16, #tpu.memory_space<vmem>>, %arg4: memref<128x128xbf16, #tpu.memory_space<vmem>>, %arg5: memref<1x128xf32, #tpu.memory_space<vmem>>, %arg6: memref<128x128xbf16, #tpu.memory_space<vmem>>, %arg7: memref<1x128xf32, #tpu.memory_space<vmem>>, %arg8: memref<1x128xf32, #tpu.memory_space<vmem>>, %arg9: memref<1x128xf32, #tpu.memory_space<vmem>>) attributes {dimension_semantics = [#tpu.dimension_semantics<parallel>], iteration_bounds = array<i64: 1>, scalar_prefetch = 0 : i64, scratch_operands = 0 : i64, tpu.core_type = #tpu.core_type<tc>, window_params = [{transform_indices = @transform_0, window_bounds = array<i64: 1, 128>}, {transform_indices = @transform_1, window_bounds = array<i64: 1, 128>}, {pipeline_mode = #tpu.pipeline_mode<synchronous>, transform_indices = @transform_2, window_bounds = array<i64: 128, 128>}, {pipeline_mode = #tpu.pipeline_mode<synchronous>, transform_indices = @transform_3, window_bounds = array<i64: 128, 128>}, {pipeline_mode = #tpu.pipeline_mode<synchronous>, transform_indices = @transform_4, window_bounds = array<i64: 1, 128>}, {pipeline_mode = #tpu.pipeline_mode<synchronous>, transform_indices = @transform_5, window_bounds = array<i64: 128, 128>}, {pipeline_mode = #tpu.pipeline_mode<synchronous>, transform_indices = @transform_6, window_bounds = array<i64: 1, 128>}, {transform_indices = @transform_7, window_bounds = array<i64: 1, 128>}, {transform_indices = @transform_8, window_bounds = array<i64: 1, 128>}]} {
    %c0 = arith.constant 0 : index
    %c0_0 = arith.constant 0 : index
    %0 = vector.load %arg1[%c0, %c0_0] : memref<1x128xf32, #tpu.memory_space<vmem>>, vector<1x128xf32>
    %c0_1 = arith.constant 0 : index
    %c0_2 = arith.constant 0 : index
    %1 = vector.load %arg2[%c0_1, %c0_2] : memref<1x128xf32, #tpu.memory_space<vmem>>, vector<1x128xf32>
    %2 = arith.truncf %0 : vector<1x128xf32> to vector<1x128xbf16>
    %c0_3 = arith.constant 0 : index
    %c0_4 = arith.constant 0 : index
    %3 = vector.load %arg3[%c0_3, %c0_4] : memref<128x128xbf16, #tpu.memory_space<vmem>>, vector<128x128xbf16>
    %cst = arith.constant dense<0.000000e+00> : vector<1x128xf32>
    %4 = tpu.matmul %2, %3, %cst {dimension_numbers = #tpu.dot_dimension_numbers<[1], [0], [0], [1], [0, 0, 1, 1], [], []>} : vector<1x128xbf16>, vector<128x128xbf16>, vector<1x128xf32> -> vector<1x128xf32>
    %5 = arith.truncf %1 : vector<1x128xf32> to vector<1x128xbf16>
    %c0_5 = arith.constant 0 : index
    %c0_6 = arith.constant 0 : index
    %6 = vector.load %arg4[%c0_5, %c0_6] : memref<128x128xbf16, #tpu.memory_space<vmem>>, vector<128x128xbf16>
    %cst_7 = arith.constant dense<0.000000e+00> : vector<1x128xf32>
    %7 = tpu.matmul %5, %6, %cst_7 {dimension_numbers = #tpu.dot_dimension_numbers<[1], [0], [0], [1], [0, 0, 1, 1], [], []>} : vector<1x128xbf16>, vector<128x128xbf16>, vector<1x128xf32> -> vector<1x128xf32>
    %8 = arith.addf %4, %7 : vector<1x128xf32>
    %c0_8 = arith.constant 0 : index
    %c0_9 = arith.constant 0 : index
    %9 = vector.load %arg5[%c0_8, %c0_9] : memref<1x128xf32, #tpu.memory_space<vmem>>, vector<1x128xf32>
    %10 = arith.addf %8, %9 : vector<1x128xf32>
    %cst_10 = arith.constant 0.000000e+00 : f32
    %11 = vector.broadcast %cst_10 : f32 to vector<1x128xf32>
    %12 = arith.maximumf %10, %11 : vector<1x128xf32>
    %13 = arith.truncf %12 : vector<1x128xf32> to vector<1x128xbf16>
    %c0_11 = arith.constant 0 : index
    %c0_12 = arith.constant 0 : index
    %14 = vector.load %arg6[%c0_11, %c0_12] : memref<128x128xbf16, #tpu.memory_space<vmem>>, vector<128x128xbf16>
    %cst_13 = arith.constant dense<0.000000e+00> : vector<1x128xf32>
    %15 = tpu.matmul %13, %14, %cst_13 {dimension_numbers = #tpu.dot_dimension_numbers<[1], [0], [0], [1], [0, 0, 1, 1], [], []>} : vector<1x128xbf16>, vector<128x128xbf16>, vector<1x128xf32> -> vector<1x128xf32>
    %c0_14 = arith.constant 0 : index
    %c0_15 = arith.constant 0 : index
    %16 = vector.load %arg7[%c0_14, %c0_15] : memref<1x128xf32, #tpu.memory_space<vmem>>, vector<1x128xf32>
    %17 = arith.addf %15, %16 : vector<1x128xf32>
    %c0_16 = arith.constant 0 : index
    %c0_17 = arith.constant 0 : index
    %18 = vector.load %arg8[%c0_16, %c0_17] : memref<1x128xf32, #tpu.memory_space<vmem>>, vector<1x128xf32>
    tpu.vector_store %arg8[%c0_16, %c0_17], %17 {strides = array<i32>} : memref<1x128xf32, #tpu.memory_space<vmem>>, vector<1x128xf32>,
    %cst_18 = arith.constant 0.000000e+00 : f32
    %19 = vector.broadcast %cst_18 : f32 to vector<1x128xf32>
    %20 = arith.cmpf ogt, %0, %19 : vector<1x128xf32>
    %21 = arith.extui %20 : vector<1x128xi1> to vector<1x128xi32>
    %22 = arith.sitofp %21 : vector<1x128xi32> to vector<1x128xf32>
    %cst_19 = arith.constant -1.000000e+30 : f32
    %23 = vector.broadcast %cst_19 : f32 to vector<1x128xf32>
    %24 = arith.select %20, %17, %23 : vector<1x128xi1>, vector<1x128xf32>
    %cst_20 = arith.constant dense<0xFF800000> : vector<1xf32>
    %25 = vector.multi_reduction <maximumf>, %24, %cst_20 [1] : vector<1x128xf32> to vector<1xf32>
    %26 = vector.shape_cast %25 : vector<1xf32> to vector<1x1xf32>
    %27 = vector.broadcast %26 : vector<1x1xf32> to vector<1x128xf32>
    %28 = arith.subf %24, %27 : vector<1x128xf32>
    %29 = math.exp %28 : vector<1x128xf32>
    %30 = arith.mulf %29, %22 : vector<1x128xf32>
    %cst_21 = arith.constant dense<0.000000e+00> : vector<1xf32>
    %31 = vector.multi_reduction <add>, %30, %cst_21 [1] : vector<1x128xf32> to vector<1xf32>
    %32 = vector.shape_cast %31 : vector<1xf32> to vector<1x1xf32>
    %cst_22 = arith.constant 0.000000e+00 : f32
    %33 = vector.broadcast %cst_22 : f32 to vector<1x1xf32>
    %34 = arith.cmpf ogt, %32, %33 : vector<1x1xf32>
    %cst_23 = arith.constant 1.000000e+00 : f32
    %35 = vector.broadcast %cst_23 : f32 to vector<1x1xf32>
    %36 = arith.select %34, %32, %35 : vector<1x1xi1>, vector<1x1xf32>
    %37 = tpu.reciprocal %36 {approx = true} : vector<1x1xf32> -> vector<1x1xf32>
    %38 = vector.broadcast %37 : vector<1x1xf32> to vector<1x128xf32>
    %39 = arith.mulf %30, %38 : vector<1x128xf32>
    %c0_24 = arith.constant 0 : index
    %c0_25 = arith.constant 0 : index
    %40 = vector.load %arg9[%c0_24, %c0_25] : memref<1x128xf32, #tpu.memory_space<vmem>>, vector<1x128xf32>
    tpu.vector_store %arg9[%c0_24, %c0_25], %39 {strides = array<i32>} : memref<1x128xf32, #tpu.memory_space<vmem>>, vector<1x128xf32>,
    return
  }
  func.func @transform_0(%arg0: i32) -> (i32, i32) {
    %c0_i32 = arith.constant 0 : i32
    %c0_i32_0 = arith.constant 0 : i32
    return %arg0, %c0_i32 : i32, i32
  }
  func.func @transform_1(%arg0: i32) -> (i32, i32) {
    %c0_i32 = arith.constant 0 : i32
    %c0_i32_0 = arith.constant 0 : i32
    return %arg0, %c0_i32 : i32, i32
  }
  func.func @transform_2(%arg0: i32) -> (i32, i32) {
    %c0_i32 = arith.constant 0 : i32
    %c0_i32_0 = arith.constant 0 : i32
    %c0_i32_1 = arith.constant 0 : i32
    return %c0_i32, %c0_i32_0 : i32, i32
  }
  func.func @transform_3(%arg0: i32) -> (i32, i32) {
    %c0_i32 = arith.constant 0 : i32
    %c0_i32_0 = arith.constant 0 : i32
    %c0_i32_1 = arith.constant 0 : i32
    return %c0_i32, %c0_i32_0 : i32, i32
  }
  func.func @transform_4(%arg0: i32) -> (i32, i32) {
    %c0_i32 = arith.constant 0 : i32
    %c0_i32_0 = arith.constant 0 : i32
    %c0_i32_1 = arith.constant 0 : i32
    return %c0_i32, %c0_i32_0 : i32, i32
  }
  func.func @transform_5(%arg0: i32) -> (i32, i32) {
    %c0_i32 = arith.constant 0 : i32
    %c0_i32_0 = arith.constant 0 : i32
    %c0_i32_1 = arith.constant 0 : i32
    return %c0_i32, %c0_i32_0 : i32, i32
  }
  func.func @transform_6(%arg0: i32) -> (i32, i32) {
    %c0_i32 = arith.constant 0 : i32
    %c0_i32_0 = arith.constant 0 : i32
    %c0_i32_1 = arith.constant 0 : i32
    return %c0_i32, %c0_i32_0 : i32, i32
  }
  func.func @transform_7(%arg0: i32) -> (i32, i32) {
    %c0_i32 = arith.constant 0 : i32
    %c0_i32_0 = arith.constant 0 : i32
    return %arg0, %c0_i32 : i32, i32
  }
  func.func @transform_8(%arg0: i32) -> (i32, i32) {
    %c0_i32 = arith.constant 0 : i32
    %c0_i32_0 = arith.constant 0 : i32
    return %arg0, %c0_i32 : i32, i32
  }
}

</mosaic_0001>

<llo_original>
// kernel: tpu_custom_call.1
$region0: #{tpu_custom_call.1}
  #allocation0 [shape = 'u32[]', space=smem, size = 0x4, offset = 0x4, fixed_abs, tag = 'smem constant byte address 0x4 - core index']
  #allocation1 [shape = 'u32[144,128]{1,0:T(1,128)}', space=vmem, size = 0x12000, scoped, tag = 'internal scratch']
  %s0 = inlined_call_operand.hbm [shape: f32[1,128], index: 0, kind: input, shape index: {}]
  %s1 = inlined_call_operand.vmem [shape: f32[1,128], index: 1, kind: input, shape index: {}]
  %s2 = inlined_call_operand.hbm [shape: bf16[128,128], index: 2, kind: input, shape index: {}]
  %s3 = inlined_call_operand.hbm [shape: bf16[128,128], index: 3, kind: input, shape index: {}]
  %s4 = inlined_call_operand.vmem [shape: f32[1,128], index: 4, kind: input, shape index: {}]
  %s5 = inlined_call_operand.hbm [shape: bf16[128,128], index: 5, kind: input, shape index: {}]
  %s6 = inlined_call_operand.vmem [shape: f32[1,128], index: 6, kind: input, shape index: {}]
  %s7 = inlined_call_operand.hbm [shape: f32[1,128], index: 7, kind: output, shape index: {0}]
  %s8 = inlined_call_operand.hbm [shape: f32[1,128], index: 8, kind: output, shape index: {1}]
  %9 = xla_tuple %s7, %s8
  %s10 = sld [smem:[#allocation0]]
  $region62: #{tpu_custom_call.1} parent=0
    _
  %s12 = ssub.s32 1, %s10
  %s13 = scalar_select 0, %s12, %s10
  $region1: #{tpu_custom_call.1} parent=0
    #allocation2 [shape = 'u8[512]{0}', space=vmem, size = 0x400, scoped, tag = 'input window, operand 0, single buffered']
    #allocation3 [shape = 's32[1]{0}', space=sflag, size = 0x4, scoped, tag = 'scoped memory for tpu_custom_call.1']
    #allocation4 [shape = 's32[1]{0}', space=sflag, size = 0x4, scoped, tag = 'scoped memory for tpu_custom_call.1']
    #allocation5 [shape = 'u8[32768]{0}', space=vmem, size = 0x8000, scoped, tag = 'input window, operand 2, single buffered']
    #allocation6 [shape = 's32[1]{0}', space=sflag, size = 0x4, scoped, tag = 'scoped memory for tpu_custom_call.1']
    #allocation7 [shape = 'u8[32768]{0}', space=vmem, size = 0x8000, scoped, tag = 'input window, operand 3, single buffered']
    #allocation8 [shape = 'u8[32768]{0}', space=vmem, size = 0x8000, scoped, tag = 'input window, operand 5, single buffered']
    #allocation9 [shape = 's32[1]{0}', space=sflag, size = 0x4, scoped, tag = 'scoped memory for tpu_custom_call.1']
    #allocation10 [shape = 'u8[512]{0}', space=vmem, size = 0x400, scoped, tag = 'output window, operand 0, single buffered']
    #allocation11 [shape = 'u8[512]{0}', space=vmem, size = 0x400, scoped, tag = 'output window, operand 1, single buffered']
    #allocation12 [shape = 's32[1]{0}', space=sflag, size = 0x4, scoped, tag = 'scoped memory for tpu_custom_call.1']
    %14 = vsyncpa [#allocation3], 0
    %15 = vsyncpa [#allocation6], 0
    %16 = vsyncpa [#allocation9], 0
    %17 = vsyncpa [#allocation4], 0
    %18 = vsyncpa [#allocation12], 0
    // Predicated region
    $region2: #{tpu_custom_call.1} parent=1 // pred_check
      _
    $region3: #{tpu_custom_call.1} parent=1 // pred_check_branch
      %20 = sbr.rel (0) target = $region5
    $region4: #{tpu_custom_call.1} parent=1 // pred_region
      %s22 = ssub.s32 16, 16
      %23 = vsyncadd [#allocation3], %s22
      %s25 = sshll.u32 [#allocation2], 4
      %s26 = int_to_ptr.vmem [resolvable:$true] %s25
      %28 = dma.hbm_to_vmem [thread:$0]  %s0, 16, %s26, [#allocation3]
    $region5: #{tpu_custom_call.1} parent=1 // pred_fallthru
      _
    // Predicated region
    $region6: #{tpu_custom_call.1} parent=1 // pred_check
      _
    $region7: #{tpu_custom_call.1} parent=1 // pred_check_branch
      %30 = sbr.rel (0) target = $region9
    $region8: #{tpu_custom_call.1} parent=1 // pred_region
      _
    $region9: #{tpu_custom_call.1} parent=1 // pred_fallthru
      _
    // Predicated region
    $region10: #{tpu_custom_call.1} parent=1 // pred_check
      _
    $region11: #{tpu_custom_call.1} parent=1 // pred_check_branch
      %32 = sbr.rel (0) target = $region13
    $region12: #{tpu_custom_call.1} parent=1 // pred_region
      %s34 = ssub.s32 1024, 1024
      %35 = vsyncadd [#allocation6], %s34
      %s36 = sshll.u32 [#allocation5], 4
      %s37 = int_to_ptr.vmem [resolvable:$true] %s36
      %42 = dma.hbm_to_vmem [thread:$0]  %s2, 1024, %s37, [#allocation6], 64, 64, 4
    $region13: #{tpu_custom_call.1} parent=1 // pred_fallthru
      _
    // Predicated region
    $region14: #{tpu_custom_call.1} parent=1 // pred_check
      _
    $region15: #{tpu_custom_call.1} parent=1 // pred_check_branch
      %44 = sbr.rel (0) target = $region17
    $region16: #{tpu_custom_call.1} parent=1 // pred_region
      %s46 = ssub.s32 1024, 1024
      %47 = vsyncadd [#allocation6], %s46
      %s48 = sshll.u32 [#allocation7], 4
      %s49 = int_to_ptr.vmem [resolvable:$true] %s48
      %54 = dma.hbm_to_vmem [thread:$0]  %s3, 1024, %s49, [#allocation6], 64, 64, 4
    $region17: #{tpu_custom_call.1} parent=1 // pred_fallthru
      _
    // Predicated region
    $region18: #{tpu_custom_call.1} parent=1 // pred_check
      _
    $region19: #{tpu_custom_call.1} parent=1 // pred_check_branch
      %56 = sbr.rel (0) target = $region21
    $region20: #{tpu_custom_call.1} parent=1 // pred_region
      _
    $region21: #{tpu_custom_call.1} parent=1 // pred_fallthru
      _
    // Predicated region
    $region22: #{tpu_custom_call.1} parent=1 // pred_check
      _
    $region23: #{tpu_custom_call.1} parent=1 // pred_check_branch
      %58 = sbr.rel (0) target = $region25
    $region24: #{tpu_custom_call.1} parent=1 // pred_region
      %s60 = ssub.s32 1024, 1024
      %61 = vsyncadd [#allocation9], %s60
      %s62 = sshll.u32 [#allocation8], 4
      %s63 = int_to_ptr.vmem [resolvable:$true] %s62
      %68 = dma.hbm_to_vmem [thread:$0]  %s5, 1024, %s63, [#allocation9], 64, 64, 4
    $region25: #{tpu_custom_call.1} parent=1 // pred_fallthru
      _
    // Predicated region
    $region26: #{tpu_custom_call.1} parent=1 // pred_check
      _
    $region27: #{tpu_custom_call.1} parent=1 // pred_check_branch
      %70 = sbr.rel (0) target = $region29
    $region28: #{tpu_custom_call.1} parent=1 // pred_region
      _
    $region29: #{tpu_custom_call.1} parent=1 // pred_fallthru
      _
    // Predicated region
    $region30: #{tpu_custom_call.1} parent=1 // pred_check
      _
    $region31: #{tpu_custom_call.1} parent=1 // pred_check_branch
      %72 = sbr.rel (0) target = $region33
    $region32: #{tpu_custom_call.1} parent=1 // pred_region
      %73 = dma.done [#allocation3], 16
    $region33: #{tpu_custom_call.1} parent=1 // pred_fallthru
      _
    // Predicated region
    $region34: #{tpu_custom_call.1} parent=1 // pred_check
      _
    $region35: #{tpu_custom_call.1} parent=1 // pred_check_branch
      %75 = sbr.rel (0) target = $region37
    $region36: #{tpu_custom_call.1} parent=1 // pred_region
      %76 = dma.done [#allocation6], 1024
    $region37: #{tpu_custom_call.1} parent=1 // pred_fallthru
      _
    // Predicated region
    $region38: #{tpu_custom_call.1} parent=1 // pred_check
      _
    $region39: #{tpu_custom_call.1} parent=1 // pred_check_branch
      %78 = sbr.rel (0) target = $region41
    $region40: #{tpu_custom_call.1} parent=1 // pred_region
      %79 = dma.done [#allocation6], 1024
    $region41: #{tpu_custom_call.1} parent=1 // pred_fallthru
      _
    // Predicated region
    $region42: #{tpu_custom_call.1} parent=1 // pred_check
      _
    $region43: #{tpu_custom_call.1} parent=1 // pred_check_branch
      %81 = sbr.rel (0) target = $region45
    $region44: #{tpu_custom_call.1} parent=1 // pred_region
      %82 = dma.done [#allocation9], 1024
    $region45: #{tpu_custom_call.1} parent=1 // pred_fallthru
      _
    %v84 = vld [vmem:[#allocation2] sm:$0x1]
    %v85 = vld [vmem:[%s1] sm:$0x1]
    %v86 = vpack.c.bf16 %v84, %v84
    %v87 = vld [vmem:[#allocation5] sm:$0xf]
    %v88 = vld [vmem:[#allocation5 + $0x4] sm:$0xf]
    %v89 = vld [vmem:[#allocation5 + $0x8] sm:$0xf]
    %v90 = vld [vmem:[#allocation5 + $0xc] sm:$0xf]
    %v91 = vld [vmem:[#allocation5 + $0x10] sm:$0xf]
    %v92 = vld [vmem:[#allocation5 + $0x14] sm:$0xf]
    %v93 = vld [vmem:[#allocation5 + $0x18] sm:$0xf]
    %v94 = vld [vmem:[#allocation5 + $0x1c] sm:$0xf]
    %v95 = vld [vmem:[#allocation5 + $0x20] sm:$0xf]
    %v96 = vld [vmem:[#allocation5 + $0x24] sm:$0xf]
    %v97 = vld [vmem:[#allocation5 + $0x28] sm:$0xf]
    %v98 = vld [vmem:[#allocation5 + $0x2c] sm:$0xf]
    %v99 = vld [vmem:[#allocation5 + $0x30] sm:$0xf]
    %v100 = vld [vmem:[#allocation5 + $0x34] sm:$0xf]
    %v101 = vld [vmem:[#allocation5 + $0x38] sm:$0xf]
    %v102 = vld [vmem:[#allocation5 + $0x3c] sm:$0xf]
    %v103 = vpack.c.bf16 %v85, %v85
    %v104 = vld [vmem:[#allocation7] sm:$0xf]
    %v105 = vld [vmem:[#allocation7 + $0x4] sm:$0xf]
    %v106 = vld [vmem:[#allocation7 + $0x8] sm:$0xf]
    %v107 = vld [vmem:[#allocation7 + $0xc] sm:$0xf]
    %v108 = vld [vmem:[#allocation7 + $0x10] sm:$0xf]
    %v109 = vld [vmem:[#allocation7 + $0x14] sm:$0xf]
    %v110 = vld [vmem:[#allocation7 + $0x18] sm:$0xf]
    %v111 = vld [vmem:[#allocation7 + $0x1c] sm:$0xf]
    %v112 = vld [vmem:[#allocation7 + $0x20] sm:$0xf]
    %v113 = vld [vmem:[#allocation7 + $0x24] sm:$0xf]
    %v114 = vld [vmem:[#allocation7 + $0x28] sm:$0xf]
    %v115 = vld [vmem:[#allocation7 + $0x2c] sm:$0xf]
    %v116 = vld [vmem:[#allocation7 + $0x30] sm:$0xf]
    %v117 = vld [vmem:[#allocation7 + $0x34] sm:$0xf]
    %v118 = vld [vmem:[#allocation7 + $0x38] sm:$0xf]
    %v119 = vld [vmem:[#allocation7 + $0x3c] sm:$0xf]
    %v136 = vunpack.c.l.b16 %v104
    %v137 = vunpack.c.l.b16 %v105
    %v138 = vunpack.c.l.b16 %v106
    %v139 = vunpack.c.l.b16 %v107
    %v140 = vunpack.c.l.b16 %v108
    %v141 = vunpack.c.l.b16 %v109
    %v142 = vunpack.c.l.b16 %v110
    %v143 = vunpack.c.l.b16 %v111
    %v144 = vunpack.c.l.b16 %v112
    %v145 = vunpack.c.l.b16 %v113
    %v146 = vunpack.c.l.b16 %v114
    %v147 = vunpack.c.l.b16 %v115
    %v148 = vunpack.c.l.b16 %v116
    %v149 = vunpack.c.l.b16 %v117
    %v150 = vunpack.c.l.b16 %v118
    %v151 = vunpack.c.l.b16 %v119
    %v152 = vpack.c.b16 %v137, %v136
    %v153 = vpack.c.b16 %v139, %v138
    %v154 = vpack.c.b16 %v141, %v140
    %v155 = vpack.c.b16 %v143, %v142
    %v156 = vpack.c.b16 %v145, %v144
    %v157 = vpack.c.b16 %v147, %v146
    %v158 = vpack.c.b16 %v149, %v148
    %v159 = vpack.c.b16 %v151, %v150
    %168 = vmatprep.subr.bf16.mxu0 0
    %169 = vmatpush1.bf16.msra.mxu0 %v159
    %170 = vmatprep.subr.bf16.mxu0 0
    %171 = vmatpush1.bf16.msra.mxu0 %v158
    %172 = vmatprep.subr.bf16.mxu0 0
    %173 = vmatpush1.bf16.msra.mxu0 %v157
    %174 = vmatprep.subr.bf16.mxu0 0
    %175 = vmatpush1.bf16.msra.mxu0 %v156
    %176 = vmatprep.subr.bf16.mxu0 0
    %177 = vmatpush1.bf16.msra.mxu0 %v155
    %178 = vmatprep.subr.bf16.mxu0 0
    %179 = vmatpush1.bf16.msra.mxu0 %v154
    %180 = vmatprep.subr.bf16.mxu0 0
    %181 = vmatpush1.bf16.msra.mxu0 %v153
    %182 = vmatprep.subr.bf16.mxu0 0
    %183 = vmatpush1.bf16.msra.mxu0 %v152
    %184 = vmatprep.subr.bf16.mxu0 0
    %185 = vmatpush2.bf16.msra.mxu0 0
    %186 = vmatprep.subr.bf16.mxu0 0
    %187 = vmatpush2.bf16.msra.mxu0 0
    %188 = vmatprep.subr.bf16.mxu0 0
    %189 = vmatpush2.bf16.msra.mxu0 0
    %190 = vmatprep.subr.bf16.mxu0 0
    %191 = vmatpush2.bf16.msra.mxu0 0
    %192 = vmatprep.subr.bf16.mxu0 0
    %193 = vmatpush2.bf16.msra.mxu0 0
    %194 = vmatprep.subr.bf16.mxu0 0
    %195 = vmatpush2.bf16.msra.mxu0 0
    %196 = vmatprep.subr.bf16.mxu0 0
    %197 = vmatpush2.bf16.msra.mxu0 0
    %198 = vmatprep.subr.bf16.mxu0 0
    %199 = vmatpush2.bf16.msra.mxu0 0
    %200 = vmatprep.mubr.bf16.mxu0 0
    %201 = vmatmul.mubr.bf16.gmra.mxu0 %v103
    %v202 = vpop.f32.mrf.mxu0
    %v203 = vadd.f32 0.0, %v202
    %v204 = vpop.f32.mrf.mxu0
    %v205 = vpop.f32.mrf.mxu0
    %v206 = vpop.f32.mrf.mxu0
    %207 = vdwg.mxu0
    %v224 = vunpack.c.l.b16 %v87
    %v225 = vunpack.c.l.b16 %v88
    %v226 = vunpack.c.l.b16 %v89
    %v227 = vunpack.c.l.b16 %v90
    %v228 = vunpack.c.l.b16 %v91
    %v229 = vunpack.c.l.b16 %v92
    %v230 = vunpack.c.l.b16 %v93
    %v231 = vunpack.c.l.b16 %v94
    %v232 = vunpack.c.l.b16 %v95
    %v233 = vunpack.c.l.b16 %v96
    %v234 = vunpack.c.l.b16 %v97
    %v235 = vunpack.c.l.b16 %v98
    %v236 = vunpack.c.l.b16 %v99
    %v237 = vunpack.c.l.b16 %v100
    %v238 = vunpack.c.l.b16 %v101
    %v239 = vunpack.c.l.b16 %v102
    %v240 = vpack.c.b16 %v225, %v224
    %v241 = vpack.c.b16 %v227, %v226
    %v242 = vpack.c.b16 %v229, %v228
    %v243 = vpack.c.b16 %v231, %v230
    %v244 = vpack.c.b16 %v233, %v232
    %v245 = vpack.c.b16 %v235, %v234
    %v246 = vpack.c.b16 %v237, %v236
    %v247 = vpack.c.b16 %v239, %v238
    %256 = vmatprep.subr.bf16.mxu0 0
    %257 = vmatpush1.bf16.msra.mxu0 %v247
    %258 = vmatprep.subr.bf16.mxu0 0
    %259 = vmatpush1.bf16.msra.mxu0 %v246
    %260 = vmatprep.subr.bf16.mxu0 0
    %261 = vmatpush1.bf16.msra.mxu0 %v245
    %262 = vmatprep.subr.bf16.mxu0 0
    %263 = vmatpush1.bf16.msra.mxu0 %v244
    %264 = vmatprep.subr.bf16.mxu0 0
    %265 = vmatpush1.bf16.msra.mxu0 %v243
    %266 = vmatprep.subr.bf16.mxu0 0
    %267 = vmatpush1.bf16.msra.mxu0 %v242
    %268 = vmatprep.subr.bf16.mxu0 0
    %269 = vmatpush1.bf16.msra.mxu0 %v241
    %270 = vmatprep.subr.bf16.mxu0 0
    %271 = vmatpush1.bf16.msra.mxu0 %v240
    %272 = vmatprep.subr.bf16.mxu0 0
    %273 = vmatpush2.bf16.msra.mxu0 0
    %274 = vmatprep.subr.bf16.mxu0 0
    %275 = vmatpush2.bf16.msra.mxu0 0
    %276 = vmatprep.subr.bf16.mxu0 0
    %277 = vmatpush2.bf16.msra.mxu0 0
    %278 = vmatprep.subr.bf16.mxu0 0
    %279 = vmatpush2.bf16.msra.mxu0 0
    %280 = vmatprep.subr.bf16.mxu0 0
    %281 = vmatpush2.bf16.msra.mxu0 0
    %282 = vmatprep.subr.bf16.mxu0 0
    %283 = vmatpush2.bf16.msra.mxu0 0
    %284 = vmatprep.subr.bf16.mxu0 0
    %285 = vmatpush2.bf16.msra.mxu0 0
    %286 = vmatprep.subr.bf16.mxu0 0
    %287 = vmatpush2.bf16.msra.mxu0 0
    %288 = vmatprep.mubr.bf16.mxu0 0
    %289 = vmatmul.mubr.bf16.gmra.mxu0 %v86
    %v290 = vpop.f32.mrf.mxu0
    %v291 = vadd.f32 %v203, %v290
    %v292 = vpop.f32.mrf.mxu0
    %v293 = vpop.f32.mrf.mxu0
    %v294 = vpop.f32.mrf.mxu0
    %295 = vdwg.mxu0
    %v296 = vld [vmem:[%s4] sm:$0x1]
    %v297 = vadd.f32 %v291, %v296
    %v298 = vmax.f32 %v297, 0.0
    %v299 = vpack.c.bf16 %v298, %v298
    %v300 = vld [vmem:[#allocation8] sm:$0xf]
    %v301 = vld [vmem:[#allocation8 + $0x4] sm:$0xf]
    %v302 = vld [vmem:[#allocation8 + $0x8] sm:$0xf]
    %v303 = vld [vmem:[#allocation8 + $0xc] sm:$0xf]
    %v304 = vld [vmem:[#allocation8 + $0x10] sm:$0xf]
    %v305 = vld [vmem:[#allocation8 + $0x14] sm:$0xf]
    %v306 = vld [vmem:[#allocation8 + $0x18] sm:$0xf]
    %v307 = vld [vmem:[#allocation8 + $0x1c] sm:$0xf]
    %v308 = vld [vmem:[#allocation8 + $0x20] sm:$0xf]
    %v309 = vld [vmem:[#allocation8 + $0x24] sm:$0xf]
    %v310 = vld [vmem:[#allocation8 + $0x28] sm:$0xf]
    %v311 = vld [vmem:[#allocation8 + $0x2c] sm:$0xf]
    %v312 = vld [vmem:[#allocation8 + $0x30] sm:$0xf]
    %v313 = vld [vmem:[#allocation8 + $0x34] sm:$0xf]
    %v314 = vld [vmem:[#allocation8 + $0x38] sm:$0xf]
    %v315 = vld [vmem:[#allocation8 + $0x3c] sm:$0xf]
    %v316 = vld [vmem:[%s6] sm:$0x1]
    %v333 = vunpack.c.l.b16 %v300
    %v334 = vunpack.c.l.b16 %v301
    %v335 = vunpack.c.l.b16 %v302
    %v336 = vunpack.c.l.b16 %v303
    %v337 = vunpack.c.l.b16 %v304
    %v338 = vunpack.c.l.b16 %v305
    %v339 = vunpack.c.l.b16 %v306
    %v340 = vunpack.c.l.b16 %v307
    %v341 = vunpack.c.l.b16 %v308
    %v342 = vunpack.c.l.b16 %v309
    %v343 = vunpack.c.l.b16 %v310
    %v344 = vunpack.c.l.b16 %v311
    %v345 = vunpack.c.l.b16 %v312
    %v346 = vunpack.c.l.b16 %v313
    %v347 = vunpack.c.l.b16 %v314
    %v348 = vunpack.c.l.b16 %v315
    %v349 = vpack.c.b16 %v334, %v333
    %v350 = vpack.c.b16 %v336, %v335
    %v351 = vpack.c.b16 %v338, %v337
    %v352 = vpack.c.b16 %v340, %v339
    %v353 = vpack.c.b16 %v342, %v341
    %v354 = vpack.c.b16 %v344, %v343
    %v355 = vpack.c.b16 %v346, %v345
    %v356 = vpack.c.b16 %v348, %v347
    %365 = vmatprep.subr.bf16.mxu0 0
    %366 = vmatpush1.bf16.msra.mxu0 %v356
    %367 = vmatprep.subr.bf16.mxu0 0
    %368 = vmatpush1.bf16.msra.mxu0 %v355
    %369 = vmatprep.subr.bf16.mxu0 0
    %370 = vmatpush1.bf16.msra.mxu0 %v354
    %371 = vmatprep.subr.bf16.mxu0 0
    %372 = vmatpush1.bf16.msra.mxu0 %v353
    %373 = vmatprep.subr.bf16.mxu0 0
    %374 = vmatpush1.bf16.msra.mxu0 %v352
    %375 = vmatprep.subr.bf16.mxu0 0
    %376 = vmatpush1.bf16.msra.mxu0 %v351
    %377 = vmatprep.subr.bf16.mxu0 0
    %378 = vmatpush1.bf16.msra.mxu0 %v350
    %379 = vmatprep.subr.bf16.mxu0 0
    %380 = vmatpush1.bf16.msra.mxu0 %v349
    %381 = vmatprep.subr.bf16.mxu0 0
    %382 = vmatpush2.bf16.msra.mxu0 0
    %383 = vmatprep.subr.bf16.mxu0 0
    %384 = vmatpush2.bf16.msra.mxu0 0
    %385 = vmatprep.subr.bf16.mxu0 0
    %386 = vmatpush2.bf16.msra.mxu0 0
    %387 = vmatprep.subr.bf16.mxu0 0
    %388 = vmatpush2.bf16.msra.mxu0 0
    %389 = vmatprep.subr.bf16.mxu0 0
    %390 = vmatpush2.bf16.msra.mxu0 0
    %391 = vmatprep.subr.bf16.mxu0 0
    %392 = vmatpush2.bf16.msra.mxu0 0
    %393 = vmatprep.subr.bf16.mxu0 0
    %394 = vmatpush2.bf16.msra.mxu0 0
    %395 = vmatprep.subr.bf16.mxu0 0
    %396 = vmatpush2.bf16.msra.mxu0 0
    %397 = vmatprep.mubr.bf16.mxu0 0
    %398 = vmatmul.mubr.bf16.gmra.mxu0 %v299
    %v399 = vpop.f32.mrf.mxu0
    %v400 = vadd.f32 %v316, %v399
    %v401 = vpop.f32.mrf.mxu0
    %v402 = vpop.f32.mrf.mxu0
    %v403 = vpop.f32.mrf.mxu0
    %404 = vdwg.mxu0
    %405 = vst [vmem:[#allocation10] sm:$0x1] %v400
    %vm406 = vcmp.gt.f32.partialorder %v84, 0.0
    %v407 = vsel %vm406, 1, 0
    %v408 = vcvt.s32.f32 %v407
    %v409 = vsel %vm406, %v400, -1e+30
    %vm410 = vcmask 1040384
    %v411 = vsel %vm410, %v409, -inf
    %412 = vmax.xlane.f32.xlu0 %v411
    %v413 = vpop.xlane.xlu0 %412
    %v414 = vsub.f32 %v409, %v413
    %v415 = vmul.f32 %v414, 1.442695
    %v416 = vpow.pop %v415
    %v417 = vmul.f32 %v416, %v408
    %v418 = vsel %vm410, %v417, 0.0
    %419 = vadd.xlane.f32.xlu0 %v418
    %v420 = vpop.xlane.xlu0 %419
    %vm421 = vcmp.gt.f32.partialorder %v420, 0.0
    %v422 = vsel %vm421, %v420, 1.0
    %v423 = vrcp.pop %v422
    %v424 = vmul.f32 %v417, %v423
    %425 = vst [vmem:[#allocation11] sm:$0x1] %v424
    // Predicated region
    $region46: #{tpu_custom_call.1} parent=1 // pred_check
      _
    $region47: #{tpu_custom_call.1} parent=1 // pred_check_branch
      %427 = sbr.rel (0) target = $region49
    $region48: #{tpu_custom_call.1} parent=1 // pred_region
      %s429 = ssub.s32 16, 16
      %430 = vsyncadd [#allocation4], %s429
      %s432 = sshll.u32 [#allocation10], 4
      %s433 = int_to_ptr.vmem [resolvable:$true] %s432
      %435 = dma.vmem_to_hbm [thread:$0]  %s433, 16, %s7, [#allocation4]
    $region49: #{tpu_custom_call.1} parent=1 // pred_fallthru
      _
    // Predicated region
    $region50: #{tpu_custom_call.1} parent=1 // pred_check
      _
    $region51: #{tpu_custom_call.1} parent=1 // pred_check_branch
      %437 = sbr.rel (0) target = $region53
    $region52: #{tpu_custom_call.1} parent=1 // pred_region
      %s439 = ssub.s32 16, 16
      %440 = vsyncadd [#allocation12], %s439
      %s442 = sshll.u32 [#allocation11], 4
      %s443 = int_to_ptr.vmem [resolvable:$true] %s442
      %445 = dma.vmem_to_hbm [thread:$0]  %s443, 16, %s8, [#allocation12]
    $region53: #{tpu_custom_call.1} parent=1 // pred_fallthru
      _
    // Predicated region
    $region54: #{tpu_custom_call.1} parent=1 // pred_check
      _
    $region55: #{tpu_custom_call.1} parent=1 // pred_check_branch
      %447 = sbr.rel (0) target = $region57
    $region56: #{tpu_custom_call.1} parent=1 // pred_region
      %448 = dma.done [#allocation4], 16
    $region57: #{tpu_custom_call.1} parent=1 // pred_fallthru
      _
    // Predicated region
    $region58: #{tpu_custom_call.1} parent=1 // pred_check
      _
    $region59: #{tpu_custom_call.1} parent=1 // pred_check_branch
      %450 = sbr.rel (0) target = $region61
    $region60: #{tpu_custom_call.1} parent=1 // pred_region
      %451 = dma.done [#allocation12], 16
    $region61: #{tpu_custom_call.1} parent=1 // pred_fallthru
      _
    %452 = vsyncpa [#allocation3], 1
    %453 = vsyncpa [#allocation6], 1
    %454 = vsyncpa [#allocation9], 1
    %455 = vsyncpa [#allocation4], 1
    %456 = vsyncpa [#allocation12], 1

</llo_original>
